<compile_context>
chip_gen: v6e
topology: v6e:2x2x1
jax: 0.10.0
libtpu: 0.0.40
codegen_flags: <defaults>
</compile_context>

<pallas_src>
import functools

import jax
import jax.numpy as jnp
from jax.experimental import pallas as pl
from jax.experimental.pallas import tpu as pltpu

_LANE = 128           # lane-axis tiling quantum (last dim)
_PAD_BIAS = -1e9      # logit for padded (non-existent) classes


def _round_up(x, m):
    return (x + m - 1) // m * m


def _vmem_capacity_bytes():
    try:
        return int(pltpu.get_tpu_info().vmem_capacity_bytes)
    except Exception:
        return 64 * 1024 * 1024  # conservative default (v7x per-TC VMEM)


_VMEM_CAP_BYTES = _vmem_capacity_bytes()


def _linear_head_kernel(x_ref, w_ref, b_ref, o_ref):
    # x_ref: (tm, D)   w_ref: (D, Cp)   b_ref: (1, Cp) f32   o_ref: (tm, Cp)
    acc = jnp.dot(x_ref[...], w_ref[...], preferred_element_type=jnp.float32)
    o_ref[...] = (acc + b_ref[...]).astype(o_ref.dtype)


def prepare_classifier_params(weight, bias, *, param_dtype=None):
    """Pre-transpose + lane-pad nn.Linear params (do this ONCE at init time).

    weight: (C, D) PyTorch layout, bias: (C,)
    Returns w_t: (D, Cp) in param_dtype and b2d: (1, Cp) in f32 with
    Cp = round_up(C, 128) so the kernel's output stores are lane-dense.
    Padded bias entries get a large negative value so padded logits can be
    consumed directly by softmax/argmax if return_padded=True is used.
    """
    C, D = weight.shape
    if param_dtype is None:
        param_dtype = weight.dtype
    Cp = _round_up(C, _LANE)
    w_t = jnp.zeros((D, Cp), param_dtype).at[:, :C].set(weight.T.astype(param_dtype))
    b2d = jnp.full((1, Cp), _PAD_BIAS, jnp.float32).at[0, :C].set(
        bias.astype(jnp.float32))
    # TODO(synk): if D is not a multiple of 128 in a real model, pad D once at
    # init (in w_t and in the activation producer) to keep x-tile loads fully
    # lane-dense; legal without it since the block covers the full D.
    return w_t, b2d


def _choose_tm(M, D, Cp, itemsize, tm):
    sub = 8 * (4 // itemsize)            # sublane quantum: 8 (f32), 16 (bf16)
    if tm is None:
        # Bigger default row tile on 128 MiB parts (v5e/v6e), 512 on v7x.
        tm = 1024 if _VMEM_CAP_BYTES >= 100 * 1024 * 1024 else 512
    tm = max(sub, _round_up(min(tm, _round_up(M, sub)), sub))

    budget = int(_VMEM_CAP_BYTES * 0.75)

    def need(t):
        # double-buffered x tile + double-buffered out tile
        # + single-buffered resident weight + f32 bias
        return (2 * t * D * itemsize + 2 * t * Cp * itemsize
                + D * Cp * itemsize + Cp * 4)

    while tm > sub and need(tm) > budget:
        tm = max(sub, _round_up(tm // 2, sub))

    # Megacore friendliness (v7x, 2 TCs): prefer >= 2 tiles, ideally even.
    num_tiles = pl.cdiv(M, tm)
    if num_tiles == 1 and M > sub:
        tm = max(sub, _round_up(pl.cdiv(M, 2), sub))
    elif num_tiles > 1 and num_tiles % 2 == 1:
        cand = max(sub, tm - sub)
        if cand != tm and pl.cdiv(M, cand) % 2 == 0:
            tm = cand
    return tm


@functools.partial(jax.jit,
                   static_argnames=("num_classes", "tm", "return_padded"))
def linear_segmentation_head_prepared(x, w_t, b2d, *, num_classes, tm=None,
                                      return_padded=False):
    """logits = x @ w_t + b with pre-transposed/padded params (see prepare).

    If return_padded=True the (B, N, Cp) lane-padded logits are returned
    without a de-pad slice (padded classes carry a large negative logit).
    """
    B, N, D = x.shape
    Cp = w_t.shape[1]
    M = B * N
    itemsize = jnp.dtype(x.dtype).itemsize

    tm = _choose_tm(M, D, Cp, itemsize, tm)
    grid = (pl.cdiv(M, tm),)            # partial last block handled by Pallas

    x2d = x.reshape(M, D)               # pure view-style reshape, no pad pass

    # VMEM accounting: x/out double-buffered, weight/bias single-buffered.
    vmem_need = (2 * tm * D * itemsize + 2 * tm * Cp * itemsize
                 + D * Cp * itemsize + Cp * 4)
    headroom = _VMEM_CAP_BYTES - 8 * 1024 * 1024   # leave Mosaic scratch room
    vmem_limit = int(min(max(int(vmem_need * 1.25), 16 * 1024 * 1024),
                         headroom))

    cost = pl.CostEstimate(
        flops=2 * M * D * Cp,
        transcendentals=0,
        bytes_accessed=(M * D + D * Cp + M * Cp) * itemsize + Cp * 4,
    )

    out = pl.pallas_call(
        _linear_head_kernel,
        out_shape=jax.ShapeDtypeStruct((M, Cp), x.dtype),
        grid_spec=pltpu.PrefetchScalarGridSpec(
            num_scalar_prefetch=0,
            grid=grid,
            in_specs=[
                # Row tile of tokens: double-buffered (default).
                pl.BlockSpec((tm, D), lambda i: (i, 0)),
                # Resident weight / bias: constant index_map -> single buffer.
                pl.BlockSpec((D, Cp), lambda i: (0, 0),
                             pipeline_mode=pl.Buffered(1)),
                pl.BlockSpec((1, Cp), lambda i: (0, 0),
                             pipeline_mode=pl.Buffered(1)),
            ],
            out_specs=pl.BlockSpec((tm, Cp), lambda i: (i, 0)),
        ),
        compiler_params=pltpu.CompilerParams(
            dimension_semantics=("parallel",),
            vmem_limit_bytes=vmem_limit,
        ),
        cost_estimate=cost,
    )(x2d, w_t, b2d)

    if return_padded:
        return out.reshape(B, N, Cp)
    if num_classes == Cp:
        return out.reshape(B, N, Cp)
    return out[:, :num_classes].reshape(B, N, num_classes)


def linear_segmentation_head(x, weight, bias, *, tm=None):
    """Convenience wrapper matching nn.Linear(embed_dim, num_classes).

    In a real model call prepare_classifier_params ONCE at init time and use
    linear_segmentation_head_prepared directly in the forward pass (this
    wrapper re-pads/transposes the weight every call, demo/test only).
    """
    C = weight.shape[0]
    w_t, b2d = prepare_classifier_params(weight, bias, param_dtype=x.dtype)
    return linear_segmentation_head_prepared(x, w_t, b2d, num_classes=C, tm=tm)


def _reference(x, weight, bias):
    # Pure-JAX reference (matches torch.nn.Linear semantics).
    return jnp.einsum("bnd,cd->bnc", x, weight) + bias


if __name__ == "__main__":
    # Small shapes consistent with the module: B=2 images, N=8 patch tokens,
    # embed_dim=32, num_classes=16.
    B, N, D, C = 2, 8, 32, 16

    key = jax.random.PRNGKey(0)
    kx, kw, kb = jax.random.split(key, 3)

    x = jax.random.normal(kx, (B, N, D), dtype=jnp.float32)
    weight = jax.random.normal(kw, (C, D), dtype=jnp.float32) * 0.02
    bias = jax.random.normal(kb, (C,), dtype=jnp.float32) * 0.01

    ref = _reference(x, weight, bias)

    # f32 path
    logits = jax.block_until_ready(linear_segmentation_head(x, weight, bias))
    assert logits.shape == (B, N, C), logits.shape
    assert jnp.allclose(logits, ref, atol=1e-5, rtol=1e-5), \
        "f32 mismatch vs reference"

    # bf16 I/O path (halved HBM traffic, f32 accumulation inside the kernel).
    logits_bf16 = jax.block_until_ready(
        linear_segmentation_head(x.astype(jnp.bfloat16),
                                 weight.astype(jnp.bfloat16), bias))
    assert logits_bf16.shape == (B, N, C)
    assert jnp.allclose(logits_bf16.astype(jnp.float32), ref,
                        atol=2e-2, rtol=2e-2), "bf16 mismatch vs reference"

    # Ragged-M path: M=120 with explicit tm=64 exercises the partial last
    # block (no row padding anywhere).
    x2 = jax.random.normal(kx, (3, 40, D), dtype=jnp.float32)
    logits2 = jax.block_until_ready(
        linear_segmentation_head(x2, weight, bias, tm=64))
    assert logits2.shape == (3, 40, C)
    assert jnp.allclose(logits2, _reference(x2, weight, bias),
                        atol=1e-5, rtol=1e-5), "ragged-M mismatch vs reference"

    # Padded-output path: lane-padded (B, N, Cp) logits consumed directly;
    # padded classes carry a large negative logit so argmax stays correct.
    w_t, b2d = prepare_classifier_params(x.dtype.type and weight, bias)
    padded = jax.block_until_ready(
        linear_segmentation_head_prepared(x, w_t, b2d, num_classes=C,
                                          return_padded=True))
    assert padded.shape == (B, N, _round_up(C, _LANE))
    assert jnp.allclose(padded[..., :C], ref, atol=1e-5, rtol=1e-5)
    assert jnp.array_equal(jnp.argmax(padded, axis=-1),
                           jnp.argmax(ref, axis=-1)), "padded argmax mismatch"

    print("KERNEL_OK")
</pallas_src>

<mosaic_0001>
module attributes {stable_mosaic.version = 11 : i64} {
  func.func @_linear_head_kernel(%arg0: i32, %arg1: memref<8x32xf32, #tpu.memory_space<vmem>>, %arg2: memref<32x128xf32, #tpu.memory_space<vmem>>, %arg3: memref<1x128xf32, #tpu.memory_space<vmem>>, %arg4: memref<8x128xf32, #tpu.memory_space<vmem>>) attributes {dimension_semantics = [#tpu.dimension_semantics<parallel>], iteration_bounds = array<i64: 2>, scalar_prefetch = 0 : i64, scratch_operands = 0 : i64, tpu.core_type = #tpu.core_type<tc>, window_params = [{transform_indices = @transform_0, window_bounds = array<i64: 8, 32>}, {pipeline_mode = #tpu.pipeline_mode<synchronous>, transform_indices = @transform_1, window_bounds = array<i64: 32, 128>}, {pipeline_mode = #tpu.pipeline_mode<synchronous>, transform_indices = @transform_2, window_bounds = array<i64: 1, 128>}, {transform_indices = @transform_3, window_bounds = array<i64: 8, 128>}]} {
    %c0 = arith.constant 0 : index
    %c0_0 = arith.constant 0 : index
    %0 = vector.load %arg1[%c0, %c0_0] : memref<8x32xf32, #tpu.memory_space<vmem>>, vector<8x32xf32>
    %c0_1 = arith.constant 0 : index
    %c0_2 = arith.constant 0 : index
    %1 = vector.load %arg2[%c0_1, %c0_2] : memref<32x128xf32, #tpu.memory_space<vmem>>, vector<32x128xf32>
    %cst = arith.constant dense<0.000000e+00> : vector<8x128xf32>
    %2 = tpu.matmul %0, %1, %cst {dimension_numbers = #tpu.dot_dimension_numbers<[1], [0], [0], [1], [0, 0, 1, 1], [], []>} : vector<8x32xf32>, vector<32x128xf32>, vector<8x128xf32> -> vector<8x128xf32>
    %c0_3 = arith.constant 0 : index
    %c0_4 = arith.constant 0 : index
    %3 = vector.load %arg3[%c0_3, %c0_4] : memref<1x128xf32, #tpu.memory_space<vmem>>, vector<1x128xf32>
    %4 = vector.broadcast %3 : vector<1x128xf32> to vector<8x128xf32>
    %5 = arith.addf %2, %4 : vector<8x128xf32>
    %c0_5 = arith.constant 0 : index
    %c0_6 = arith.constant 0 : index
    %6 = vector.load %arg4[%c0_5, %c0_6] : memref<8x128xf32, #tpu.memory_space<vmem>>, vector<8x128xf32>
    tpu.vector_store %arg4[%c0_5, %c0_6], %5 {strides = array<i32>} : memref<8x128xf32, #tpu.memory_space<vmem>>, vector<8x128xf32>,
    return
  }
  func.func @transform_0(%arg0: i32) -> (i32, i32) {
    %c0_i32 = arith.constant 0 : i32
    %c0_i32_0 = arith.constant 0 : i32
    return %arg0, %c0_i32 : i32, i32
  }
  func.func @transform_1(%arg0: i32) -> (i32, i32) {
    %c0_i32 = arith.constant 0 : i32
    %c0_i32_0 = arith.constant 0 : i32
    %c0_i32_1 = arith.constant 0 : i32
    return %c0_i32, %c0_i32_0 : i32, i32
  }
  func.func @transform_2(%arg0: i32) -> (i32, i32) {
    %c0_i32 = arith.constant 0 : i32
    %c0_i32_0 = arith.constant 0 : i32
    %c0_i32_1 = arith.constant 0 : i32
    return %c0_i32, %c0_i32_0 : i32, i32
  }
  func.func @transform_3(%arg0: i32) -> (i32, i32) {
    %c0_i32 = arith.constant 0 : i32
    %c0_i32_0 = arith.constant 0 : i32
    return %arg0, %c0_i32 : i32, i32
  }
}

</mosaic_0001>

<llo_original>
// kernel: linear_segmentation_head_prepared.1
$region0: #{linear_segmentation_head_prepared.1}
  #allocation0 [shape = 'u32[]', space=smem, size = 0x4, offset = 0x4, fixed_abs, tag = 'smem constant byte address 0x4 - core index']
  #allocation1 [shape = 'u32[144,128]{1,0:T(1,128)}', space=vmem, size = 0x12000, scoped, tag = 'internal scratch']
  %s0 = inlined_call_operand.hbm [shape: f32[16,32], index: 0, kind: input, shape index: {}]
  %s1 = inlined_call_operand.hbm [shape: f32[32,128], index: 1, kind: input, shape index: {}]
  %s2 = inlined_call_operand.vmem [shape: f32[1,128], index: 2, kind: input, shape index: {}]
  %s3 = inlined_call_operand.vmem [shape: f32[16,128], index: 3, kind: output, shape index: {}]
  %s4 = sld [smem:[#allocation0]]
  $region53: #{linear_segmentation_head_prepared.1} parent=0
    _
  %s6 = ssub.s32 1, %s4
  %s7 = scalar_select 0, %s6, %s4
  $region1: #{linear_segmentation_head_prepared.1} parent=0
    #allocation2 [shape = 'u8[8192]{0}', space=vmem, size = 0x2000, scoped, tag = 'input window, operand 0']
    #allocation3 [shape = 's32[2]{0}', space=sflag, size = 0x8, scoped, tag = 'scoped memory for linear_segmentation_head_prepared.1']
    #allocation4 [shape = 'u8[16384]{0}', space=vmem, size = 0x4000, scoped, tag = 'input window, operand 1, single buffered']
    #allocation5 [shape = 's32[1]{0}', space=sflag, size = 0x4, scoped, tag = 'scoped memory for linear_segmentation_head_prepared.1']
    %8 = vsyncpa [#allocation3], 0
    %s9 = scalar_lea.sflag [#allocation3], 1
    %10 = vsyncpa %s9, 0
    %11 = vsyncpa [#allocation5], 0
    loop: start=0, step=1, limit=4
    $region2: #{linear_segmentation_head_prepared.1} parent=1 // loop_pre_header
      _
    $region3: #{linear_segmentation_head_prepared.1} parent=1 // loop_header
      %s13 = sphi 0, %s17
      %p14 = scmp.ge.s32.totalorder %s13, 4
      %s23 = sphi 0, %s25
      %s26 = sphi 0, %s23
      %s27 = sphi 0, %s26
      %s43 = sphi 0, %s27
      %s47 = sphi 0, %s47
      %s49 = sphi 0, %s47
      %s50 = sphi 0, %s49
      %s64 = sphi 0, %s50
      %s68 = sphi 0, %s68
      %s70 = sphi 0, %s68
      %s71 = sphi 0, %s70
      %s85 = sphi 0, %s71
      %s91 = sphi 0, %s93
      %s94 = sphi 0, %s91
      %s95 = sphi 0, %s94
      %s111 = sphi 0, %s95
    $region4: #{linear_segmentation_head_prepared.1} parent=1 // loop_header_branch
      %16 = sbr.rel (%p14) target = $region8
    $region5: #{linear_segmentation_head_prepared.1} parent=1 // loop_body
      %s18 = ssub.s32 %s13, 1
      %s19 = ssub.s32 %s13, 2
      %s20 = sadd.s32 %s13, 1
      %s21 = ssub.s32 %s13, %s20
      %p22 = scmp.eq.s32.totalorder %s21, 0
      %s24 = sadd.s32 %s23, 1
      %s25 = scalar_select %p22, %s23, %s24
      %p28 = pneg %p22
      %p29 = scmp.eq.s32.totalorder %s13, 1
      %p30 = por %p28, %p29
      %p31 = scmp.ne.s32.totalorder %s23, %s26
      %p32 = scmp.eq.s32.totalorder %s13, 0
      %p33 = por %p31, %p32
      %p34 = scmp.ne.s32.totalorder %s23, %s26
      %p35 = scmp.eq.s32.totalorder %s18, 1
      %p36 = por %p34, %p35
      %p37 = scmp.ne.s32.totalorder %s26, %s27
      %p38 = scmp.eq.s32.totalorder %s18, 0
      %p39 = por %p37, %p38
      %p40 = scmp.ne.s32.totalorder %s26, %s27
      %p41 = scmp.eq.s32.totalorder %s19, 1
      %p42 = por %p40, %p41
      %p44 = scmp.ne.s32.totalorder %s27, %s43
      %p45 = scmp.eq.s32.totalorder %s19, 0
      %p46 = por %p44, %p45
      %s48 = sadd.s32 %s47, 1
      %p51 = scmp.eq.s32.totalorder %s13, 1
      %p52 = scmp.ne.s32.totalorder %s47, %s49
      %p53 = scmp.eq.s32.totalorder %s13, 0
      %p54 = por %p52, %p53
      %p55 = scmp.ne.s32.totalorder %s47, %s49
      %p56 = scmp.eq.s32.totalorder %s18, 1
      %p57 = por %p55, %p56
      %p58 = scmp.ne.s32.totalorder %s49, %s50
      %p59 = scmp.eq.s32.totalorder %s18, 0
      %p60 = por %p58, %p59
      %p61 = scmp.ne.s32.totalorder %s49, %s50
      %p62 = scmp.eq.s32.totalorder %s19, 1
      %p63 = por %p61, %p62
      %p65 = scmp.ne.s32.totalorder %s50, %s64
      %p66 = scmp.eq.s32.totalorder %s19, 0
      %p67 = por %p65, %p66
      %s69 = sadd.s32 %s68, 1
      %p72 = scmp.eq.s32.totalorder %s13, 1
      %p73 = scmp.ne.s32.totalorder %s68, %s70
      %p74 = scmp.eq.s32.totalorder %s13, 0
      %p75 = por %p73, %p74
      %p76 = scmp.ne.s32.totalorder %s68, %s70
      %p77 = scmp.eq.s32.totalorder %s18, 1
      %p78 = por %p76, %p77
      %p79 = scmp.ne.s32.totalorder %s70, %s71
      %p80 = scmp.eq.s32.totalorder %s18, 0
      %p81 = por %p79, %p80
      %p82 = scmp.ne.s32.totalorder %s70, %s71
      %p83 = scmp.eq.s32.totalorder %s19, 1
      %p84 = por %p82, %p83
      %p86 = scmp.ne.s32.totalorder %s71, %s85
      %p87 = scmp.eq.s32.totalorder %s19, 0
      %p88 = por %p86, %p87
      %s89 = ssub.s32 %s13, %s20
      %p90 = scmp.eq.s32.totalorder %s89, 0
      %s92 = sadd.s32 %s91, 1
      %s93 = scalar_select %p90, %s91, %s92
      %p96 = pneg %p90
      %p97 = scmp.eq.s32.totalorder %s13, 1
      %p98 = por %p96, %p97
      %p99 = scmp.ne.s32.totalorder %s91, %s94
      %p100 = scmp.eq.s32.totalorder %s13, 0
      %p101 = por %p99, %p100
      %p102 = scmp.ne.s32.totalorder %s91, %s94
      %p103 = scmp.eq.s32.totalorder %s18, 1
      %p104 = por %p102, %p103
      %p105 = scmp.ne.s32.totalorder %s94, %s95
      %p106 = scmp.eq.s32.totalorder %s18, 0
      %p107 = por %p105, %p106
      %p108 = scmp.ne.s32.totalorder %s94, %s95
      %p109 = scmp.eq.s32.totalorder %s19, 1
      %p110 = por %p108, %p109
      %p112 = scmp.ne.s32.totalorder %s95, %s111
      %p113 = scmp.eq.s32.totalorder %s19, 0
      %p114 = por %p112, %p113
      %p115 = scmp.le.s32.totalorder 1, %s13
      %p116 = scmp.lt.s32.totalorder %s13, 3
      %p117 = pnand %p115, %p116
      %p118 = pneg %p117
      // Predicated region
      $region9: #{linear_segmentation_head_prepared.1} parent=5 // pred_check
        _
      $region10: #{linear_segmentation_head_prepared.1} parent=5 // pred_check_branch
        %120 = sbr.rel (%p117) target = $region12
      $region11: #{linear_segmentation_head_prepared.1} parent=5 // pred_region
        %s121 = ssub.s32 %s13, 1
        // Predicated region
        $region13: #{linear_segmentation_head_prepared.1} parent=11 // pred_check
          %p122 = pneg %p60
        $region14: #{linear_segmentation_head_prepared.1} parent=11 // pred_check_branch
          %124 = sbr.rel (%p122) target = $region16
        $region15: #{linear_segmentation_head_prepared.1} parent=11 // pred_region
          %s126 = ssub.s32 512, 512
          %127 = vsyncadd [#allocation5], %s126
          %s128 = sshll.u32 [#allocation4], 4
          %s129 = int_to_ptr.vmem [resolvable:$true] %s128
          %134 = dma.hbm_to_vmem [thread:$0]  %s1, 512, %s129, [#allocation5], 128, 128, 8
        $region16: #{linear_segmentation_head_prepared.1} parent=11 // pred_fallthru
          _
        // Predicated region
        $region17: #{linear_segmentation_head_prepared.1} parent=11 // pred_check
          %p135 = pneg %p81
        $region18: #{linear_segmentation_head_prepared.1} parent=11 // pred_check_branch
          %137 = sbr.rel (%p135) target = $region20
        $region19: #{linear_segmentation_head_prepared.1} parent=11 // pred_region
          _
        $region20: #{linear_segmentation_head_prepared.1} parent=11 // pred_fallthru
          _
      $region12: #{linear_segmentation_head_prepared.1} parent=5 // pred_fallthru
        _
      %p138 = scmp.lt.s32.totalorder %s13, 2
      // Predicated region
      $region21: #{linear_segmentation_head_prepared.1} parent=5 // pred_check
        %p139 = pneg %p138
      $region22: #{linear_segmentation_head_prepared.1} parent=5 // pred_check_branch
        %141 = sbr.rel (%p139) target = $region24
      $region23: #{linear_segmentation_head_prepared.1} parent=5 // pred_region
        // Predicated region
        $region25: #{linear_segmentation_head_prepared.1} parent=23 // pred_check
          %p142 = pneg %p33
        $region26: #{linear_segmentation_head_prepared.1} parent=23 // pred_check_branch
          %144 = sbr.rel (%p142) target = $region28
        $region27: #{linear_segmentation_head_prepared.1} parent=23 // pred_region
          %s145 = sand.u32 %s23, 1
          %s146 = scalar_lea.sflag [#allocation3], %s145
          %s147 = sand.u32 %s23, 1
          %s148 = smul.addr %s147, 8
          %s149 = scalar_lea.vmem [#allocation2], %s148
          %s151 = ssub.s32 128, 128
          %152 = vsyncadd %s146, %s151
          %s153 = smul.addr %s13, 128
          %s154 = scalar_lea.hbm %s0, %s153
          %s156 = sshll.u32 %s149, 4
          %s157 = int_to_ptr.vmem [resolvable:$true] %s156
          %159 = dma.hbm_to_vmem [thread:$0]  %s154, 128, %s157, %s146
        $region28: #{linear_segmentation_head_prepared.1} parent=23 // pred_fallthru
          _
      $region24: #{linear_segmentation_head_prepared.1} parent=5 // pred_fallthru
        _
      %p160 = scmp.le.s32.totalorder 1, %s13
      %p161 = scmp.lt.s32.totalorder %s13, 3
      %p162 = pnand %p160, %p161
      %p163 = pneg %p162
      // Predicated region
      $region29: #{linear_segmentation_head_prepared.1} parent=5 // pred_check
        _
      $region30: #{linear_segmentation_head_prepared.1} parent=5 // pred_check_branch
        %165 = sbr.rel (%p162) target = $region32
      $region31: #{linear_segmentation_head_prepared.1} parent=5 // pred_region
        %s166 = ssub.s32 %s13, 1
        %s167 = sand.u32 %s26, 1
        %s168 = scalar_lea.sflag [#allocation3], %s167
        %s169 = sand.u32 %s26, 1
        %s170 = smul.addr %s169, 8
        %s171 = scalar_lea.vmem [#allocation2], %s170
        // Predicated region
        $region33: #{linear_segmentation_head_prepared.1} parent=31 // pred_check
          %p172 = pneg %p39
        $region34: #{linear_segmentation_head_prepared.1} parent=31 // pred_check_branch
          %174 = sbr.rel (%p172) target = $region36
        $region35: #{linear_segmentation_head_prepared.1} parent=31 // pred_region
          %175 = dma.done %s168, 128
        $region36: #{linear_segmentation_head_prepared.1} parent=31 // pred_fallthru
          _
        // Predicated region
        $region37: #{linear_segmentation_head_prepared.1} parent=31 // pred_check
          %p176 = pneg %p60
        $region38: #{linear_segmentation_head_prepared.1} parent=31 // pred_check_branch
          %178 = sbr.rel (%p176) target = $region40
        $region39: #{linear_segmentation_head_prepared.1} parent=31 // pred_region
          %179 = dma.done [#allocation5], 512
        $region40: #{linear_segmentation_head_prepared.1} parent=31 // pred_fallthru
          _
        %s180 = sand.u32 %s26, 1
        %s181 = scalar_lea.sflag [#allocation3], %s180
        %s182 = sand.u32 %s26, 1
        %s183 = smul.addr %s182, 8
        %s184 = scalar_lea.vmem [#allocation2], %s183
        %p185 = pneg %p39
        %p186 = pneg %p36
        %p187 = pneg %p60
        %p188 = pneg %p57
        %p189 = pneg %p81
        %p190 = pneg %p78
        %p191 = pneg %p107
        %p192 = pneg %p104
        %p193 = scmp.lt.s32.totalorder %s18, 1
        %s194 = scalar_select %p193, %s18, 1
        %s195 = smul.addr %s194, 8
        %s196 = scalar_lea.vmem %s3, %s195
        %p197 = scmp.lt.s32.totalorder %s18, 1
        %s198 = scalar_select %p197, %s18, 1
        %s199 = smul.addr %s198, 8
        %s200 = scalar_lea.vmem %s3, %s199
        %v201 = vld [vmem:[%s171] sm:$0xff]
        %v202 = vld [vmem:[#allocation4] sm:$0xff]
        %v203 = vld [vmem:[#allocation4 + $0x8] sm:$0xff]
        %v204 = vld [vmem:[#allocation4 + $0x10] sm:$0xff]
        %v205 = vld [vmem:[#allocation4 + $0x18] sm:$0xff]
        %v206 = vld [vmem:[%s2] sm:$0x1]
        %v208 = vlaneseq
        %v209 = vshrl.u32 %v208, 7
        %v210 = vsub.s32 0, %v209
        %v211 = vrot.slane %v206, %v210
        %vm213 = vcmask 261120
        %v215 = vsel %vm213, %v201, 0
        %217 = vmatprep.subr.mxu0 0.0
        %218 = vmatpush1.msra.mxu0 0.0
        %219 = vmatprep.subr.mxu0 0.0
        %220 = vmatpush1.msra.mxu0 0.0
        %221 = vmatprep.subr.mxu0 0.0
        %222 = vmatpush1.msra.mxu0 0.0
        %223 = vmatprep.subr.mxu0 0.0
        %224 = vmatpush1.msra.mxu0 0.0
        %225 = vmatprep.subr.mxu0 0.0
        %226 = vmatpush1.msra.mxu0 0.0
        %227 = vmatprep.subr.mxu0 0.0
        %228 = vmatpush1.msra.mxu0 0.0
        %229 = vmatprep.subr.mxu0 0.0
        %230 = vmatpush1.msra.mxu0 0.0
        %231 = vmatprep.subr.mxu0 0.0
        %232 = vmatpush1.msra.mxu0 0.0
        %233 = vmatprep.subr.mxu0 0.0
        %234 = vmatpush1.msra.mxu0 0.0
        %235 = vmatprep.subr.mxu0 0.0
        %236 = vmatpush1.msra.mxu0 0.0
        %237 = vmatprep.subr.mxu0 0.0
        %238 = vmatpush1.msra.mxu0 0.0
        %239 = vmatprep.subr.mxu0 0.0
        %240 = vmatpush1.msra.mxu0 0.0
        %241 = vmatprep.subr.mxu0 0.0
        %242 = vmatpush1.msra.mxu0 %v205
        %243 = vmatprep.subr.mxu0 0.0
        %244 = vmatpush1.msra.mxu0 %v204
        %245 = vmatprep.subr.mxu0 0.0
        %246 = vmatpush1.msra.mxu0 %v203
        %247 = vmatprep.subr.mxu0 0.0
        %248 = vmatpush1.msra.mxu0 %v202
        %249 = vmatprep.subr.mxu0 0.0
        %250 = vmatpush2.msra.mxu0 0.0
        %251 = vmatprep.subr.mxu0 0.0
        %252 = vmatpush2.msra.mxu0 0.0
        %253 = vmatprep.subr.mxu0 0.0
        %254 = vmatpush2.msra.mxu0 0.0
        %255 = vmatprep.subr.mxu0 0.0
        %256 = vmatpush2.msra.mxu0 0.0
        %257 = vmatprep.subr.mxu0 0.0
        %258 = vmatpush2.msra.mxu0 0.0
        %259 = vmatprep.subr.mxu0 0.0
        %260 = vmatpush2.msra.mxu0 0.0
        %261 = vmatprep.subr.mxu0 0.0
        %262 = vmatpush2.msra.mxu0 0.0
        %263 = vmatprep.subr.mxu0 0.0
        %264 = vmatpush2.msra.mxu0 0.0
        %265 = vmatprep.subr.mxu0 0.0
        %266 = vmatpush2.msra.mxu0 0.0
        %267 = vmatprep.subr.mxu0 0.0
        %268 = vmatpush2.msra.mxu0 0.0
        %269 = vmatprep.subr.mxu0 0.0
        %270 = vmatpush2.msra.mxu0 0.0
        %271 = vmatprep.subr.mxu0 0.0
        %272 = vmatpush2.msra.mxu0 0.0
        %273 = vmatprep.subr.mxu0 0.0
        %274 = vmatpush2.msra.mxu0 0.0
        %275 = vmatprep.subr.mxu0 0.0
        %276 = vmatpush2.msra.mxu0 0.0
        %277 = vmatprep.subr.mxu0 0.0
        %278 = vmatpush2.msra.mxu0 0.0
        %279 = vmatprep.subr.mxu0 0.0
        %280 = vmatpush2.msra.mxu0 0.0
        %281 = vmatprep.mubr.f32.mxu0 0.0
        %282 = vmatmul.mubr.f32.gmra.mxu0 %v215
        %v283 = vpop.f32.mrf.mxu0
        %v284 = vadd.f32 %v211, %v283
        %v285 = vpop.f32.mrf.mxu0
        %286 = vdwg.mxu0
        %287 = vst [vmem:[%s200] sm:$0xff] %v284
        %p288 = scmp.lt.s32.totalorder %s18, 1
        %s289 = scalar_select %p288, %s18, 1
        %s290 = smul.addr %s289, 8
        %s291 = scalar_lea.vmem %s3, %s290
        // Predicated region
        $region41: #{linear_segmentation_head_prepared.1} parent=31 // pred_check
          %p292 = pneg %p104
        $region42: #{linear_segmentation_head_prepared.1} parent=31 // pred_check_branch
          %294 = sbr.rel (%p292) target = $region44
        $region43: #{linear_segmentation_head_prepared.1} parent=31 // pred_region
          _
        $region44: #{linear_segmentation_head_prepared.1} parent=31 // pred_fallthru
          _
      $region32: #{linear_segmentation_head_prepared.1} parent=5 // pred_fallthru
        _
      %p295 = scmp.le.s32.totalorder 2, %s13
      // Predicated region
      $region45: #{linear_segmentation_head_prepared.1} parent=5 // pred_check
        %p296 = pneg %p295
      $region46: #{linear_segmentation_head_prepared.1} parent=5 // pred_check_branch
        %298 = sbr.rel (%p296) target = $region48
      $region47: #{linear_segmentation_head_prepared.1} parent=5 // pred_region
        %s299 = ssub.s32 %s13, 2
        // Predicated region
        $region49: #{linear_segmentation_head_prepared.1} parent=47 // pred_check
          %p300 = pneg %p110
        $region50: #{linear_segmentation_head_prepared.1} parent=47 // pred_check_branch
          %302 = sbr.rel (%p300) target = $region52
        $region51: #{linear_segmentation_head_prepared.1} parent=47 // pred_region
          %p303 = scmp.lt.s32.totalorder %s19, 1
          %s304 = scalar_select %p303, %s19, 1
          %s305 = smul.addr %s304, 8
          %s306 = scalar_lea.vmem %s3, %s305
        $region52: #{linear_segmentation_head_prepared.1} parent=47 // pred_fallthru
          _
      $region48: #{linear_segmentation_head_prepared.1} parent=5 // pred_fallthru
        _
    $region6: #{linear_segmentation_head_prepared.1} parent=1 // loop_footer
      %s17 = sadd.s32 1, %s13
    $region7: #{linear_segmentation_head_prepared.1} parent=1 // loop_footer_branch
      %12 = sbr.rel target = $region3
    $region8: #{linear_segmentation_head_prepared.1} parent=1 // loop_exit
      _
    %307 = vsyncpa [#allocation3], 1
    %s308 = scalar_lea.sflag [#allocation3], 1
    %309 = vsyncpa %s308, 1
    %310 = vsyncpa [#allocation5], 1

</llo_original>
